<compile_context>
chip_gen: v5e
topology: v5e:2x2
jax: 0.10.0
libtpu: 0.0.40
codegen_flags: <defaults>
</compile_context>

<pallas_src>
import jax
import jax.numpy as jnp
from jax.experimental import pallas as pl
from jax.experimental.pallas import tpu as pltpu

EPS = 1e-07

_MAX_TILE_HW = 131072   # max lanes per grid step (~24 MiB/step VMEM at f32 out)
_MIN_TILE_HW = 1024     # below this the HBM roofline fraction drops sharply


def _round_up(x: int, m: int) -> int:
    return ((x + m - 1) // m) * m


def _choose_tiling(hw: int, max_tile: int = _MAX_TILE_HW,
                   min_tile: int = _MIN_TILE_HW):
    """Returns (tile_hw, hw_pad): lane tile per step and padded spatial extent.

    tile_hw is always a multiple of 128 and divides hw_pad; hw_pad >= hw.
    """
    hw128 = _round_up(hw, 128)
    if hw128 <= max_tile:
        return hw128, hw128                       # single tile
    t = (max_tile // 128) * 128
    while t >= min_tile:
        if hw128 % t == 0:
            return t, hw128                       # exact 128-aligned divisor
        t -= 128
    # No 128-aligned divisor >= min_tile: pad to a multiple of max_tile
    # (bounded waste; keeps big lane tiles instead of collapsing to 128).
    return max_tile, _round_up(hw128, max_tile)


def _preproc_model_kernel(mean_ref, inv_std_ref, w_pre_ref, w_post_ref,
                          w_r1_ref, w_r2_ref, b_ref, pre_ref, post_ref,
                          out_ref):
    """Fused normalize + ratio + 1x1-conv for one (batch, hw-tile).

      mean_ref, inv_std_ref : (2, 1)  norm params (ratio channels only)
      w_pre_ref, w_post_ref : (O, 2)  folded 1x1-conv weights (direct channels)
      w_r1_ref, w_r2_ref    : (O, 1)  1x1-conv weights for the ratio channels
      b_ref                 : (O, 1)  folded bias
      pre_ref, post_ref     : (2, T)  raw pixels, rows = [vv, vh]
      out_ref               : (O, T)  model output tile
    """
    # Widen on load; arithmetic stays f32 (safe on v5e which has no bf16 VPU).
    pre = pre_ref[...].astype(jnp.float32)              # (2, T)
    post = post_ref[...].astype(jnp.float32)            # (2, T)

    m = mean_ref[...]                                   # (2, 1)
    inv_s = inv_std_ref[...]                            # (2, 1)

    # Ratio channels need the explicit normalization; the affine normalize of
    # the direct channels is folded into w_pre / w_post / bias host-side.
    x1 = (pre - m) * inv_s
    x2 = (post - m) * inv_s
    r1 = x1[1:2, :] / (x1[0:1, :] + EPS)                # (1, T) exact division
    r2 = x2[1:2, :] / (x2[0:1, :] + EPS)                # (matches reference)

    # 1x1 conv == channel mixing.  Direct channels via two tiny MXU dots,
    # ratio channels as VPU outer-product accumulates.  Everything stays in
    # vregs; no feature slab is staged in VMEM.
    acc = jnp.dot(w_pre_ref[...], pre, preferred_element_type=jnp.float32)
    acc = acc + jnp.dot(w_post_ref[...], post, preferred_element_type=jnp.float32)
    acc = acc + w_r1_ref[...] * r1                      # (O,1)*(1,T) -> (O,T)
    acc = acc + w_r2_ref[...] * r2
    out_ref[...] = (acc + b_ref[...]).astype(out_ref.dtype)


def preprocessing_wrapper_forward(images, means, stds, weight, bias, *,
                                  img_order_forward=True, out_dtype=None):
    """images: list of 2 arrays shaped [B, C, H, W] (C == 2, NCHW), timesteps
    [pre, post].  weight: (O, 6) 1x1-conv weight over channel order
    [vv1, vh1, ratio1, vv2, vh2, ratio2]; bias: (O,).
    Returns model output [B, O, H, W] in `out_dtype` (default float32)."""
    assert len(images) == 2, "this kernel implements the 2-timestep config"
    if not img_order_forward:
        images = list(reversed(images))
    img_pre, img_post = images

    B, C, H, W = img_pre.shape
    assert C == 2, "PreprocessingWrapper expects (vv, vh) Sentinel-1 images"
    assert img_post.shape == (B, C, H, W)
    HW = H * W
    O = weight.shape[0]
    assert weight.shape[1] == 2 * (C + 1)
    out_dtype = jnp.float32 if out_dtype is None else out_dtype

    # Flatten spatial dims (free, contiguous reshape); keep native dtype so the
    # kernel reads the inputs exactly once from HBM.
    pre_flat = img_pre.reshape(B, C, HW)
    post_flat = img_post.reshape(B, C, HW)

    tile_hw, hw_pad = _choose_tiling(HW)
    n_tiles = hw_pad // tile_hw
    if hw_pad != HW:
        # Rare path (HW not a multiple of 128 / no good divisor): pad with
        # zeros so every tile is full.  Padded lanes are sliced off below.
        pad = ((0, 0), (0, 0), (0, hw_pad - HW))
        pre_flat = jnp.pad(pre_flat, pad)
        post_flat = jnp.pad(post_flat, pad)

    # Host-side parameter prep (tiny, traced once).
    means_f = jnp.asarray(means, jnp.float32).reshape(C)
    stds_f = jnp.asarray(stds, jnp.float32).reshape(C)
    weight_f = jnp.asarray(weight, jnp.float32)
    bias_f = jnp.asarray(bias, jnp.float32).reshape(O)
    inv_std = 1.0 / stds_f

    # Fold the affine normalization of the 4 direct channels into W / bias:
    #   W' = W * diag(1/s),  b' = b - W @ (m/s)   (direct columns only).
    w_pre = weight_f[:, 0:2] * inv_std[None, :]          # (O, 2) [vv1, vh1]
    w_post = weight_f[:, 3:5] * inv_std[None, :]         # (O, 2) [vv2, vh2]
    w_r1 = weight_f[:, 2:3]                              # (O, 1) ratio1
    w_r2 = weight_f[:, 5:6]                              # (O, 1) ratio2
    b_fold = (bias_f
              - (weight_f[:, 0] + weight_f[:, 3]) * means_f[0] * inv_std[0]
              - (weight_f[:, 1] + weight_f[:, 4]) * means_f[1] * inv_std[1]
              ).reshape(O, 1)
    mean_col = means_f.reshape(C, 1)
    inv_std_col = inv_std.reshape(C, 1)

    out = pl.pallas_call(
        _preproc_model_kernel,
        out_shape=jax.ShapeDtypeStruct((B, O, hw_pad), out_dtype),
        grid_spec=pltpu.PrefetchScalarGridSpec(
            num_scalar_prefetch=0,
            grid=(B, n_tiles),
            in_specs=[
                pl.BlockSpec((C, 1), lambda b, t: (0, 0)),             # mean
                pl.BlockSpec((C, 1), lambda b, t: (0, 0)),             # 1/std
                pl.BlockSpec((O, C), lambda b, t: (0, 0)),             # w_pre
                pl.BlockSpec((O, C), lambda b, t: (0, 0)),             # w_post
                pl.BlockSpec((O, 1), lambda b, t: (0, 0)),             # w_r1
                pl.BlockSpec((O, 1), lambda b, t: (0, 0)),             # w_r2
                pl.BlockSpec((O, 1), lambda b, t: (0, 0)),             # bias
                pl.BlockSpec((None, C, tile_hw), lambda b, t: (b, 0, t)),  # pre
                pl.BlockSpec((None, C, tile_hw), lambda b, t: (b, 0, t)),  # post
            ],
            out_specs=pl.BlockSpec((None, O, tile_hw), lambda b, t: (b, 0, t)),
        ),
        compiler_params=pltpu.CompilerParams(
            dimension_semantics=("parallel", "parallel"),
            vmem_limit_bytes=48 * 1024 * 1024),
    )(mean_col, inv_std_col, w_pre, w_post, w_r1, w_r2, b_fold,
      pre_flat, post_flat)

    if hw_pad != HW:
        out = out[..., :HW]
    return out.reshape(B, O, H, W)


if __name__ == "__main__":
    key = jax.random.PRNGKey(0)
    B, C, H, W = 2, 2, 16, 16          # (vv, vh) Sentinel-1 images, 2 timesteps
    O = 8                               # model output channels (1x1 conv)
    C_cat = 2 * (C + 1)                 # 2 timesteps x (2 channels + ratio)

    k1, k2, k3, k4 = jax.random.split(key, 4)
    img_pre = jax.random.normal(k1, (B, C, H, W), dtype=jnp.float32)
    img_post = jax.random.normal(k2, (B, C, H, W), dtype=jnp.float32)

    # Deterministic "checkpoint": normalization stats + 1x1-conv model params.
    means = jnp.array([0.1, -0.2], dtype=jnp.float32)
    stds = jnp.array([0.5, 0.8], dtype=jnp.float32)
    weight = 0.1 * jax.random.normal(k3, (O, C_cat), dtype=jnp.float32)
    bias = 0.01 * jax.random.normal(k4, (O,), dtype=jnp.float32)

    out = preprocessing_wrapper_forward([img_pre, img_post],
                                        means, stds, weight, bias)
    out = jax.block_until_ready(out)

    # Pure-JAX reference of the same forward pass (sanity check).
    def ref(images):
        m = means.reshape(1, C, 1, 1)
        s = stds.reshape(1, C, 1, 1)
        feats = []
        for im in images:
            x = (im - m) / s
            ratio = x[:, 1:2] / (x[:, 0:1] + EPS)
            feats.append(jnp.concatenate([x, ratio], axis=1))
        cat = jnp.concatenate(feats, axis=1)                     # (B, 6, H, W)
        y = jnp.einsum("oc,bchw->bohw", weight, cat) + bias.reshape(1, O, 1, 1)
        return y

    ref_out = ref([img_pre, img_post])
    assert out.shape == (B, O, H, W)
    assert jnp.allclose(out, ref_out, atol=1e-4, rtol=1e-3), "mismatch vs reference"

    print("KERNEL_OK")
</pallas_src>

<mosaic_0001>
module attributes {stable_mosaic.version = 11 : i64} {
  func.func @_preproc_model_kernel(%arg0: i32, %arg1: i32, %arg2: memref<2x1xf32, #tpu.memory_space<vmem>>, %arg3: memref<2x1xf32, #tpu.memory_space<vmem>>, %arg4: memref<8x2xf32, #tpu.memory_space<vmem>>, %arg5: memref<8x2xf32, #tpu.memory_space<vmem>>, %arg6: memref<8x1xf32, #tpu.memory_space<vmem>>, %arg7: memref<8x1xf32, #tpu.memory_space<vmem>>, %arg8: memref<8x1xf32, #tpu.memory_space<vmem>>, %arg9: memref<1x2x256xf32, #tpu.memory_space<vmem>>, %arg10: memref<1x2x256xf32, #tpu.memory_space<vmem>>, %arg11: memref<1x8x256xf32, #tpu.memory_space<vmem>>) attributes {dimension_semantics = [#tpu.dimension_semantics<parallel>, #tpu.dimension_semantics<parallel>], iteration_bounds = array<i64: 2, 1>, scalar_prefetch = 0 : i64, scratch_operands = 0 : i64, tpu.core_type = #tpu.core_type<tc>, window_params = [{pipeline_mode = #tpu.pipeline_mode<synchronous>, transform_indices = @transform_0, window_bounds = array<i64: 2, 1>}, {pipeline_mode = #tpu.pipeline_mode<synchronous>, transform_indices = @transform_1, window_bounds = array<i64: 2, 1>}, {pipeline_mode = #tpu.pipeline_mode<synchronous>, transform_indices = @transform_2, window_bounds = array<i64: 8, 2>}, {pipeline_mode = #tpu.pipeline_mode<synchronous>, transform_indices = @transform_3, window_bounds = array<i64: 8, 2>}, {pipeline_mode = #tpu.pipeline_mode<synchronous>, transform_indices = @transform_4, window_bounds = array<i64: 8, 1>}, {pipeline_mode = #tpu.pipeline_mode<synchronous>, transform_indices = @transform_5, window_bounds = array<i64: 8, 1>}, {pipeline_mode = #tpu.pipeline_mode<synchronous>, transform_indices = @transform_6, window_bounds = array<i64: 8, 1>}, {transform_indices = @transform_7, window_bounds = array<i64: 1, 2, 256>}, {transform_indices = @transform_8, window_bounds = array<i64: 1, 2, 256>}, {transform_indices = @transform_9, window_bounds = array<i64: 1, 8, 256>}]} {
    %c0 = arith.constant 0 : index
    %c0_0 = arith.constant 0 : index
    %c0_1 = arith.constant 0 : index
    %0 = vector.load %arg9[%c0, %c0_0, %c0_1] : memref<1x2x256xf32, #tpu.memory_space<vmem>>, vector<1x2x256xf32>
    %1 = vector.shape_cast %0 : vector<1x2x256xf32> to vector<2x256xf32>
    %c0_2 = arith.constant 0 : index
    %c0_3 = arith.constant 0 : index
    %c0_4 = arith.constant 0 : index
    %2 = vector.load %arg10[%c0_2, %c0_3, %c0_4] : memref<1x2x256xf32, #tpu.memory_space<vmem>>, vector<1x2x256xf32>
    %3 = vector.shape_cast %2 : vector<1x2x256xf32> to vector<2x256xf32>
    %c0_5 = arith.constant 0 : index
    %c0_6 = arith.constant 0 : index
    %4 = vector.load %arg2[%c0_5, %c0_6] : memref<2x1xf32, #tpu.memory_space<vmem>>, vector<2x1xf32>
    %c0_7 = arith.constant 0 : index
    %c0_8 = arith.constant 0 : index
    %5 = vector.load %arg3[%c0_7, %c0_8] : memref<2x1xf32, #tpu.memory_space<vmem>>, vector<2x1xf32>
    %6 = vector.broadcast %4 : vector<2x1xf32> to vector<2x256xf32>
    %7 = arith.subf %1, %6 : vector<2x256xf32>
    %8 = vector.broadcast %5 : vector<2x1xf32> to vector<2x256xf32>
    %9 = arith.mulf %7, %8 : vector<2x256xf32>
    %10 = vector.broadcast %4 : vector<2x1xf32> to vector<2x256xf32>
    %11 = arith.subf %3, %10 : vector<2x256xf32>
    %12 = vector.broadcast %5 : vector<2x1xf32> to vector<2x256xf32>
    %13 = arith.mulf %11, %12 : vector<2x256xf32>
    %14 = vector.extract_strided_slice %9 {offsets = [1, 0], sizes = [1, 256], strides = [1, 1]} : vector<2x256xf32> to vector<1x256xf32>
    %15 = vector.extract_strided_slice %9 {offsets = [0, 0], sizes = [1, 256], strides = [1, 1]} : vector<2x256xf32> to vector<1x256xf32>
    %cst = arith.constant 1.000000e-07 : f32
    %16 = vector.broadcast %cst : f32 to vector<1x256xf32>
    %17 = arith.addf %15, %16 : vector<1x256xf32>
    %18 = arith.divf %14, %17 : vector<1x256xf32>
    %19 = vector.extract_strided_slice %13 {offsets = [1, 0], sizes = [1, 256], strides = [1, 1]} : vector<2x256xf32> to vector<1x256xf32>
    %20 = vector.extract_strided_slice %13 {offsets = [0, 0], sizes = [1, 256], strides = [1, 1]} : vector<2x256xf32> to vector<1x256xf32>
    %cst_9 = arith.constant 1.000000e-07 : f32
    %21 = vector.broadcast %cst_9 : f32 to vector<1x256xf32>
    %22 = arith.addf %20, %21 : vector<1x256xf32>
    %23 = arith.divf %19, %22 : vector<1x256xf32>
    %c0_10 = arith.constant 0 : index
    %c0_11 = arith.constant 0 : index
    %24 = vector.load %arg4[%c0_10, %c0_11] : memref<8x2xf32, #tpu.memory_space<vmem>>, vector<8x2xf32>
    %cst_12 = arith.constant dense<0.000000e+00> : vector<8x256xf32>
    %25 = tpu.matmul %24, %1, %cst_12 {dimension_numbers = #tpu.dot_dimension_numbers<[1], [0], [0], [1], [0, 0, 1, 1], [], []>} : vector<8x2xf32>, vector<2x256xf32>, vector<8x256xf32> -> vector<8x256xf32>
    %c0_13 = arith.constant 0 : index
    %c0_14 = arith.constant 0 : index
    %26 = vector.load %arg5[%c0_13, %c0_14] : memref<8x2xf32, #tpu.memory_space<vmem>>, vector<8x2xf32>
    %cst_15 = arith.constant dense<0.000000e+00> : vector<8x256xf32>
    %27 = tpu.matmul %26, %3, %cst_15 {dimension_numbers = #tpu.dot_dimension_numbers<[1], [0], [0], [1], [0, 0, 1, 1], [], []>} : vector<8x2xf32>, vector<2x256xf32>, vector<8x256xf32> -> vector<8x256xf32>
    %28 = arith.addf %25, %27 : vector<8x256xf32>
    %c0_16 = arith.constant 0 : index
    %c0_17 = arith.constant 0 : index
    %29 = vector.load %arg6[%c0_16, %c0_17] : memref<8x1xf32, #tpu.memory_space<vmem>>, vector<8x1xf32>
    %30 = vector.broadcast %29 : vector<8x1xf32> to vector<8x256xf32>
    %31 = vector.broadcast %18 : vector<1x256xf32> to vector<8x256xf32>
    %32 = arith.mulf %30, %31 : vector<8x256xf32>
    %33 = arith.addf %28, %32 : vector<8x256xf32>
    %c0_18 = arith.constant 0 : index
    %c0_19 = arith.constant 0 : index
    %34 = vector.load %arg7[%c0_18, %c0_19] : memref<8x1xf32, #tpu.memory_space<vmem>>, vector<8x1xf32>
    %35 = vector.broadcast %34 : vector<8x1xf32> to vector<8x256xf32>
    %36 = vector.broadcast %23 : vector<1x256xf32> to vector<8x256xf32>
    %37 = arith.mulf %35, %36 : vector<8x256xf32>
    %38 = arith.addf %33, %37 : vector<8x256xf32>
    %c0_20 = arith.constant 0 : index
    %c0_21 = arith.constant 0 : index
    %39 = vector.load %arg8[%c0_20, %c0_21] : memref<8x1xf32, #tpu.memory_space<vmem>>, vector<8x1xf32>
    %40 = vector.broadcast %39 : vector<8x1xf32> to vector<8x256xf32>
    %41 = arith.addf %38, %40 : vector<8x256xf32>
    %c0_22 = arith.constant 0 : index
    %c0_23 = arith.constant 0 : index
    %c0_24 = arith.constant 0 : index
    %42 = vector.load %arg11[%c0_22, %c0_23, %c0_24] : memref<1x8x256xf32, #tpu.memory_space<vmem>>, vector<1x8x256xf32>
    %43 = vector.shape_cast %42 : vector<1x8x256xf32> to vector<8x256xf32>
    %44 = vector.shape_cast %41 : vector<8x256xf32> to vector<1x8x256xf32>
    tpu.vector_store %arg11[%c0_22, %c0_23, %c0_24], %44 {strides = array<i32>} : memref<1x8x256xf32, #tpu.memory_space<vmem>>, vector<1x8x256xf32>,
    return
  }
  func.func @transform_0(%arg0: i32, %arg1: i32) -> (i32, i32) {
    %c0_i32 = arith.constant 0 : i32
    %c0_i32_0 = arith.constant 0 : i32
    %c0_i32_1 = arith.constant 0 : i32
    return %c0_i32, %c0_i32_0 : i32, i32
  }
  func.func @transform_1(%arg0: i32, %arg1: i32) -> (i32, i32) {
    %c0_i32 = arith.constant 0 : i32
    %c0_i32_0 = arith.constant 0 : i32
    %c0_i32_1 = arith.constant 0 : i32
    return %c0_i32, %c0_i32_0 : i32, i32
  }
  func.func @transform_2(%arg0: i32, %arg1: i32) -> (i32, i32) {
    %c0_i32 = arith.constant 0 : i32
    %c0_i32_0 = arith.constant 0 : i32
    %c0_i32_1 = arith.constant 0 : i32
    return %c0_i32, %c0_i32_0 : i32, i32
  }
  func.func @transform_3(%arg0: i32, %arg1: i32) -> (i32, i32) {
    %c0_i32 = arith.constant 0 : i32
    %c0_i32_0 = arith.constant 0 : i32
    %c0_i32_1 = arith.constant 0 : i32
    return %c0_i32, %c0_i32_0 : i32, i32
  }
  func.func @transform_4(%arg0: i32, %arg1: i32) -> (i32, i32) {
    %c0_i32 = arith.constant 0 : i32
    %c0_i32_0 = arith.constant 0 : i32
    %c0_i32_1 = arith.constant 0 : i32
    return %c0_i32, %c0_i32_0 : i32, i32
  }
  func.func @transform_5(%arg0: i32, %arg1: i32) -> (i32, i32) {
    %c0_i32 = arith.constant 0 : i32
    %c0_i32_0 = arith.constant 0 : i32
    %c0_i32_1 = arith.constant 0 : i32
    return %c0_i32, %c0_i32_0 : i32, i32
  }
  func.func @transform_6(%arg0: i32, %arg1: i32) -> (i32, i32) {
    %c0_i32 = arith.constant 0 : i32
    %c0_i32_0 = arith.constant 0 : i32
    %c0_i32_1 = arith.constant 0 : i32
    return %c0_i32, %c0_i32_0 : i32, i32
  }
  func.func @transform_7(%arg0: i32, %arg1: i32) -> (i32, i32, i32) {
    %c0_i32 = arith.constant 0 : i32
    %c0_i32_0 = arith.constant 0 : i32
    return %arg0, %c0_i32, %arg1 : i32, i32, i32
  }
  func.func @transform_8(%arg0: i32, %arg1: i32) -> (i32, i32, i32) {
    %c0_i32 = arith.constant 0 : i32
    %c0_i32_0 = arith.constant 0 : i32
    return %arg0, %c0_i32, %arg1 : i32, i32, i32
  }
  func.func @transform_9(%arg0: i32, %arg1: i32) -> (i32, i32, i32) {
    %c0_i32 = arith.constant 0 : i32
    %c0_i32_0 = arith.constant 0 : i32
    return %arg0, %c0_i32, %arg1 : i32, i32, i32
  }
}

</mosaic_0001>

<llo_original>
// kernel: tpu_custom_call.1
$region0: #{tpu_custom_call.1}
  #allocation0 [shape = 'u32[]', space=smem, size = 0x4, offset = 0x4, fixed_abs, tag = 'smem constant byte address 0x4 - core index']
  #allocation1 [shape = 'u32[72,128]{1,0:T(1,128)}', space=vmem, size = 0x9000, scoped, tag = 'internal scratch']
  %s0 = inlined_call_operand.vmem [shape: f32[2,1], index: 0, kind: input, shape index: {}]
  %s1 = inlined_call_operand.vmem [shape: f32[2,1], index: 1, kind: input, shape index: {}]
  %s2 = inlined_call_operand.vmem [shape: f32[8,2], index: 2, kind: input, shape index: {}]
  %s3 = inlined_call_operand.vmem [shape: f32[8,2], index: 3, kind: input, shape index: {}]
  %s4 = inlined_call_operand.vmem [shape: f32[8,1], index: 4, kind: input, shape index: {}]
  %s5 = inlined_call_operand.vmem [shape: f32[8,1], index: 5, kind: input, shape index: {}]
  %s6 = inlined_call_operand.vmem [shape: f32[8,1], index: 6, kind: input, shape index: {}]
  %s7 = inlined_call_operand.vmem [shape: f32[2,2,256], index: 7, kind: input, shape index: {}]
  %s8 = inlined_call_operand.vmem [shape: f32[2,2,256], index: 8, kind: input, shape index: {}]
  %s9 = inlined_call_operand.hbm [shape: f32[2,8,256], index: 9, kind: output, shape index: {}]
  %s10 = sld [smem:[#allocation0]]
  $region69: #{tpu_custom_call.1} parent=0
    _
  %s12 = ssub.s32 1, %s10
  %s13 = scalar_select 0, %s12, %s10
  $region1: #{tpu_custom_call.1} parent=0
    #allocation2 [shape = 'u8[16384]{0}', space=vmem, size = 0x4000, scoped, tag = 'output window, operand 0']
    #allocation3 [shape = 's32[2]{0}', space=sflag, size = 0x8, scoped, tag = 'scoped memory for tpu_custom_call.1']
    %14 = vsyncpa [#allocation3], 0
    %s15 = scalar_lea.sflag [#allocation3], 1
    %16 = vsyncpa %s15, 0
    loop: start=0, step=1, limit=4
    $region2: #{tpu_custom_call.1} parent=1 // loop_pre_header
      _
    $region3: #{tpu_custom_call.1} parent=1 // loop_header
      %s18 = sphi 0, %s22
      %p19 = scmp.ge.s32.totalorder %s18, 4
      %s25 = sphi 0, %s37
      %s26 = sphi 0, %s33
      %s27 = sphi 0, %s25
      %s28 = sphi 0, %s26
      %s29 = sphi 0, %s27
      %s30 = sphi 0, %s28
      %s38 = sphi 0, %s38
      %s40 = sphi 0, %s38
      %s41 = sphi 0, %s40
      %s55 = sphi 0, %s41
      %s59 = sphi 0, %s59
      %s61 = sphi 0, %s59
      %s62 = sphi 0, %s61
      %s76 = sphi 0, %s62
      %s80 = sphi 0, %s80
      %s82 = sphi 0, %s80
      %s83 = sphi 0, %s82
      %s97 = sphi 0, %s83
      %s101 = sphi 0, %s101
      %s103 = sphi 0, %s101
      %s104 = sphi 0, %s103
      %s118 = sphi 0, %s104
      %s122 = sphi 0, %s122
      %s124 = sphi 0, %s122
      %s125 = sphi 0, %s124
      %s139 = sphi 0, %s125
      %s143 = sphi 0, %s143
      %s145 = sphi 0, %s143
      %s146 = sphi 0, %s145
      %s160 = sphi 0, %s146
      %s164 = sphi 0, %s164
      %s166 = sphi 0, %s164
      %s167 = sphi 0, %s166
      %s181 = sphi 0, %s167
      %s189 = sphi 0, %s191
      %s192 = sphi 0, %s189
      %s193 = sphi 0, %s192
      %s209 = sphi 0, %s193
      %s217 = sphi 0, %s219
      %s220 = sphi 0, %s217
      %s221 = sphi 0, %s220
      %s237 = sphi 0, %s221
      %s245 = sphi 0, %s247
      %s248 = sphi 0, %s245
      %s249 = sphi 0, %s248
      %s265 = sphi 0, %s249
    $region4: #{tpu_custom_call.1} parent=1 // loop_header_branch
      %21 = sbr.rel (%p19) target = $region8
    $region5: #{tpu_custom_call.1} parent=1 // loop_body
      %s23 = ssub.s32 %s18, 1
      %s24 = ssub.s32 %s18, 2
      %s31 = sadd.s32 1, %s26
      %p32 = scmp.ge.s32.totalorder %s31, 1
      %s33 = scalar_select %p32, 0, %s31
      %s34 = sadd.s32 1, %s25
      %s35 = scalar_select %p32, %s34, %s25
      %p36 = scmp.ge.s32.totalorder %s35, 2
      %s37 = scalar_select %p36, 0, %s35
      %s39 = sadd.s32 %s38, 1
      %p42 = scmp.eq.s32.totalorder %s18, 1
      %p43 = scmp.ne.s32.totalorder %s38, %s40
      %p44 = scmp.eq.s32.totalorder %s18, 0
      %p45 = por %p43, %p44
      %p46 = scmp.ne.s32.totalorder %s38, %s40
      %p47 = scmp.eq.s32.totalorder %s23, 1
      %p48 = por %p46, %p47
      %p49 = scmp.ne.s32.totalorder %s40, %s41
      %p50 = scmp.eq.s32.totalorder %s23, 0
      %p51 = por %p49, %p50
      %p52 = scmp.ne.s32.totalorder %s40, %s41
      %p53 = scmp.eq.s32.totalorder %s24, 1
      %p54 = por %p52, %p53
      %p56 = scmp.ne.s32.totalorder %s41, %s55
      %p57 = scmp.eq.s32.totalorder %s24, 0
      %p58 = por %p56, %p57
      %s60 = sadd.s32 %s59, 1
      %p63 = scmp.eq.s32.totalorder %s18, 1
      %p64 = scmp.ne.s32.totalorder %s59, %s61
      %p65 = scmp.eq.s32.totalorder %s18, 0
      %p66 = por %p64, %p65
      %p67 = scmp.ne.s32.totalorder %s59, %s61
      %p68 = scmp.eq.s32.totalorder %s23, 1
      %p69 = por %p67, %p68
      %p70 = scmp.ne.s32.totalorder %s61, %s62
      %p71 = scmp.eq.s32.totalorder %s23, 0
      %p72 = por %p70, %p71
      %p73 = scmp.ne.s32.totalorder %s61, %s62
      %p74 = scmp.eq.s32.totalorder %s24, 1
      %p75 = por %p73, %p74
      %p77 = scmp.ne.s32.totalorder %s62, %s76
      %p78 = scmp.eq.s32.totalorder %s24, 0
      %p79 = por %p77, %p78
      %s81 = sadd.s32 %s80, 1
      %p84 = scmp.eq.s32.totalorder %s18, 1
      %p85 = scmp.ne.s32.totalorder %s80, %s82
      %p86 = scmp.eq.s32.totalorder %s18, 0
      %p87 = por %p85, %p86
      %p88 = scmp.ne.s32.totalorder %s80, %s82
      %p89 = scmp.eq.s32.totalorder %s23, 1
      %p90 = por %p88, %p89
      %p91 = scmp.ne.s32.totalorder %s82, %s83
      %p92 = scmp.eq.s32.totalorder %s23, 0
      %p93 = por %p91, %p92
      %p94 = scmp.ne.s32.totalorder %s82, %s83
      %p95 = scmp.eq.s32.totalorder %s24, 1
      %p96 = por %p94, %p95
      %p98 = scmp.ne.s32.totalorder %s83, %s97
      %p99 = scmp.eq.s32.totalorder %s24, 0
      %p100 = por %p98, %p99
      %s102 = sadd.s32 %s101, 1
      %p105 = scmp.eq.s32.totalorder %s18, 1
      %p106 = scmp.ne.s32.totalorder %s101, %s103
      %p107 = scmp.eq.s32.totalorder %s18, 0
      %p108 = por %p106, %p107
      %p109 = scmp.ne.s32.totalorder %s101, %s103
      %p110 = scmp.eq.s32.totalorder %s23, 1
      %p111 = por %p109, %p110
      %p112 = scmp.ne.s32.totalorder %s103, %s104
      %p113 = scmp.eq.s32.totalorder %s23, 0
      %p114 = por %p112, %p113
      %p115 = scmp.ne.s32.totalorder %s103, %s104
      %p116 = scmp.eq.s32.totalorder %s24, 1
      %p117 = por %p115, %p116
      %p119 = scmp.ne.s32.totalorder %s104, %s118
      %p120 = scmp.eq.s32.totalorder %s24, 0
      %p121 = por %p119, %p120
      %s123 = sadd.s32 %s122, 1
      %p126 = scmp.eq.s32.totalorder %s18, 1
      %p127 = scmp.ne.s32.totalorder %s122, %s124
      %p128 = scmp.eq.s32.totalorder %s18, 0
      %p129 = por %p127, %p128
      %p130 = scmp.ne.s32.totalorder %s122, %s124
      %p131 = scmp.eq.s32.totalorder %s23, 1
      %p132 = por %p130, %p131
      %p133 = scmp.ne.s32.totalorder %s124, %s125
      %p134 = scmp.eq.s32.totalorder %s23, 0
      %p135 = por %p133, %p134
      %p136 = scmp.ne.s32.totalorder %s124, %s125
      %p137 = scmp.eq.s32.totalorder %s24, 1
      %p138 = por %p136, %p137
      %p140 = scmp.ne.s32.totalorder %s125, %s139
      %p141 = scmp.eq.s32.totalorder %s24, 0
      %p142 = por %p140, %p141
      %s144 = sadd.s32 %s143, 1
      %p147 = scmp.eq.s32.totalorder %s18, 1
      %p148 = scmp.ne.s32.totalorder %s143, %s145
      %p149 = scmp.eq.s32.totalorder %s18, 0
      %p150 = por %p148, %p149
      %p151 = scmp.ne.s32.totalorder %s143, %s145
      %p152 = scmp.eq.s32.totalorder %s23, 1
      %p153 = por %p151, %p152
      %p154 = scmp.ne.s32.totalorder %s145, %s146
      %p155 = scmp.eq.s32.totalorder %s23, 0
      %p156 = por %p154, %p155
      %p157 = scmp.ne.s32.totalorder %s145, %s146
      %p158 = scmp.eq.s32.totalorder %s24, 1
      %p159 = por %p157, %p158
      %p161 = scmp.ne.s32.totalorder %s146, %s160
      %p162 = scmp.eq.s32.totalorder %s24, 0
      %p163 = por %p161, %p162
      %s165 = sadd.s32 %s164, 1
      %p168 = scmp.eq.s32.totalorder %s18, 1
      %p169 = scmp.ne.s32.totalorder %s164, %s166
      %p170 = scmp.eq.s32.totalorder %s18, 0
      %p171 = por %p169, %p170
      %p172 = scmp.ne.s32.totalorder %s164, %s166
      %p173 = scmp.eq.s32.totalorder %s23, 1
      %p174 = por %p172, %p173
      %p175 = scmp.ne.s32.totalorder %s166, %s167
      %p176 = scmp.eq.s32.totalorder %s23, 0
      %p177 = por %p175, %p176
      %p178 = scmp.ne.s32.totalorder %s166, %s167
      %p179 = scmp.eq.s32.totalorder %s24, 1
      %p180 = por %p178, %p179
      %p182 = scmp.ne.s32.totalorder %s167, %s181
      %p183 = scmp.eq.s32.totalorder %s24, 0
      %p184 = por %p182, %p183
      %s185 = ssub.s32 %s25, %s37
      %s186 = ssub.s32 %s26, %s33
      %s187 = sor.u32 %s185, %s186
      %p188 = scmp.eq.s32.totalorder %s187, 0
      %s190 = sadd.s32 %s189, 1
      %s191 = scalar_select %p188, %s189, %s190
      %p194 = pneg %p188
      %p195 = scmp.eq.s32.totalorder %s18, 1
      %p196 = por %p194, %p195
      %p197 = scmp.ne.s32.totalorder %s189, %s192
      %p198 = scmp.eq.s32.totalorder %s18, 0
      %p199 = por %p197, %p198
      %p200 = scmp.ne.s32.totalorder %s189, %s192
      %p201 = scmp.eq.s32.totalorder %s23, 1
      %p202 = por %p200, %p201
      %p203 = scmp.ne.s32.totalorder %s192, %s193
      %p204 = scmp.eq.s32.totalorder %s23, 0
      %p205 = por %p203, %p204
      %p206 = scmp.ne.s32.totalorder %s192, %s193
      %p207 = scmp.eq.s32.totalorder %s24, 1
      %p208 = por %p206, %p207
      %p210 = scmp.ne.s32.totalorder %s193, %s209
      %p211 = scmp.eq.s32.totalorder %s24, 0
      %p212 = por %p210, %p211
      %s213 = ssub.s32 %s25, %s37
      %s214 = ssub.s32 %s26, %s33
      %s215 = sor.u32 %s213, %s214
      %p216 = scmp.eq.s32.totalorder %s215, 0
      %s218 = sadd.s32 %s217, 1
      %s219 = scalar_select %p216, %s217, %s218
      %p222 = pneg %p216
      %p223 = scmp.eq.s32.totalorder %s18, 1
      %p224 = por %p222, %p223
      %p225 = scmp.ne.s32.totalorder %s217, %s220
      %p226 = scmp.eq.s32.totalorder %s18, 0
      %p227 = por %p225, %p226
      %p228 = scmp.ne.s32.totalorder %s217, %s220
      %p229 = scmp.eq.s32.totalorder %s23, 1
      %p230 = por %p228, %p229
      %p231 = scmp.ne.s32.totalorder %s220, %s221
      %p232 = scmp.eq.s32.totalorder %s23, 0
      %p233 = por %p231, %p232
      %p234 = scmp.ne.s32.totalorder %s220, %s221
      %p235 = scmp.eq.s32.totalorder %s24, 1
      %p236 = por %p234, %p235
      %p238 = scmp.ne.s32.totalorder %s221, %s237
      %p239 = scmp.eq.s32.totalorder %s24, 0
      %p240 = por %p238, %p239
      %s241 = ssub.s32 %s25, %s37
      %s242 = ssub.s32 %s26, %s33
      %s243 = sor.u32 %s241, %s242
      %p244 = scmp.eq.s32.totalorder %s243, 0
      %s246 = sadd.s32 %s245, 1
      %s247 = scalar_select %p244, %s245, %s246
      %p250 = pneg %p244
      %p251 = scmp.eq.s32.totalorder %s18, 1
      %p252 = por %p250, %p251
      %p253 = scmp.ne.s32.totalorder %s245, %s248
      %p254 = scmp.eq.s32.totalorder %s18, 0
      %p255 = por %p253, %p254
      %p256 = scmp.ne.s32.totalorder %s245, %s248
      %p257 = scmp.eq.s32.totalorder %s23, 1
      %p258 = por %p256, %p257
      %p259 = scmp.ne.s32.totalorder %s248, %s249
      %p260 = scmp.eq.s32.totalorder %s23, 0
      %p261 = por %p259, %p260
      %p262 = scmp.ne.s32.totalorder %s248, %s249
      %p263 = scmp.eq.s32.totalorder %s24, 1
      %p264 = por %p262, %p263
      %p266 = scmp.ne.s32.totalorder %s249, %s265
      %p267 = scmp.eq.s32.totalorder %s24, 0
      %p268 = por %p266, %p267
      %p269 = scmp.le.s32.totalorder 1, %s18
      %p270 = scmp.lt.s32.totalorder %s18, 3
      %p271 = pnand %p269, %p270
      %p272 = pneg %p271
      // Predicated region
      $region9: #{tpu_custom_call.1} parent=5 // pred_check
        _
      $region10: #{tpu_custom_call.1} parent=5 // pred_check_branch
        %274 = sbr.rel (%p271) target = $region12
      $region11: #{tpu_custom_call.1} parent=5 // pred_region
        %s275 = ssub.s32 %s18, 1
        // Predicated region
        $region13: #{tpu_custom_call.1} parent=11 // pred_check
          %p276 = pneg %p51
        $region14: #{tpu_custom_call.1} parent=11 // pred_check_branch
          %278 = sbr.rel (%p276) target = $region16
        $region15: #{tpu_custom_call.1} parent=11 // pred_region
          _
        $region16: #{tpu_custom_call.1} parent=11 // pred_fallthru
          _
        // Predicated region
        $region17: #{tpu_custom_call.1} parent=11 // pred_check
          %p279 = pneg %p72
        $region18: #{tpu_custom_call.1} parent=11 // pred_check_branch
          %281 = sbr.rel (%p279) target = $region20
        $region19: #{tpu_custom_call.1} parent=11 // pred_region
          _
        $region20: #{tpu_custom_call.1} parent=11 // pred_fallthru
          _
        // Predicated region
        $region21: #{tpu_custom_call.1} parent=11 // pred_check
          %p282 = pneg %p93
        $region22: #{tpu_custom_call.1} parent=11 // pred_check_branch
          %284 = sbr.rel (%p282) target = $region24
        $region23: #{tpu_custom_call.1} parent=11 // pred_region
          _
        $region24: #{tpu_custom_call.1} parent=11 // pred_fallthru
          _
        // Predicated region
        $region25: #{tpu_custom_call.1} parent=11 // pred_check
          %p285 = pneg %p114
        $region26: #{tpu_custom_call.1} parent=11 // pred_check_branch
          %287 = sbr.rel (%p285) target = $region28
        $region27: #{tpu_custom_call.1} parent=11 // pred_region
          _
        $region28: #{tpu_custom_call.1} parent=11 // pred_fallthru
          _
        // Predicated region
        $region29: #{tpu_custom_call.1} parent=11 // pred_check
          %p288 = pneg %p135
        $region30: #{tpu_custom_call.1} parent=11 // pred_check_branch
          %290 = sbr.rel (%p288) target = $region32
        $region31: #{tpu_custom_call.1} parent=11 // pred_region
          _
        $region32: #{tpu_custom_call.1} parent=11 // pred_fallthru
          _
        // Predicated region
        $region33: #{tpu_custom_call.1} parent=11 // pred_check
          %p291 = pneg %p156
        $region34: #{tpu_custom_call.1} parent=11 // pred_check_branch
          %293 = sbr.rel (%p291) target = $region36
        $region35: #{tpu_custom_call.1} parent=11 // pred_region
          _
        $region36: #{tpu_custom_call.1} parent=11 // pred_fallthru
          _
        // Predicated region
        $region37: #{tpu_custom_call.1} parent=11 // pred_check
          %p294 = pneg %p177
        $region38: #{tpu_custom_call.1} parent=11 // pred_check_branch
          %296 = sbr.rel (%p294) target = $region40
        $region39: #{tpu_custom_call.1} parent=11 // pred_region
          _
        $region40: #{tpu_custom_call.1} parent=11 // pred_fallthru
          _
      $region12: #{tpu_custom_call.1} parent=5 // pred_fallthru
        _
      %p297 = scmp.lt.s32.totalorder %s18, 2
      // Predicated region
      $region41: #{tpu_custom_call.1} parent=5 // pred_check
        %p298 = pneg %p297
      $region42: #{tpu_custom_call.1} parent=5 // pred_check_branch
        %300 = sbr.rel (%p298) target = $region44
      $region43: #{tpu_custom_call.1} parent=5 // pred_region
        // Predicated region
        $region45: #{tpu_custom_call.1} parent=43 // pred_check
          %p301 = pneg %p199
        $region46: #{tpu_custom_call.1} parent=43 // pred_check_branch
          %303 = sbr.rel (%p301) target = $region48
        $region47: #{tpu_custom_call.1} parent=43 // pred_region
          %s304 = smul.u32 2, %s26
          %p305 = scmp.lt.s32.totalorder %s25, 1
          %s306 = scalar_select %p305, %s25, 1
          %p307 = scmp.lt.s32.totalorder %s304, 1
          %s308 = scalar_select %p307, %s304, 1
          %s309 = smul.addr %s306, 2
          %s310 = sadd.s32 %s308, %s309
          %s311 = smul.addr %s310, 2
          %s312 = scalar_lea.vmem %s7, %s311
          %s313 = smul.u32 2, %s26
        $region48: #{tpu_custom_call.1} parent=43 // pred_fallthru
          _
        // Predicated region
        $region49: #{tpu_custom_call.1} parent=43 // pred_check
          %p314 = pneg %p227
        $region50: #{tpu_custom_call.1} parent=43 // pred_check_branch
          %316 = sbr.rel (%p314) target = $region52
        $region51: #{tpu_custom_call.1} parent=43 // pred_region
          %s317 = smul.u32 2, %s26
          %p318 = scmp.lt.s32.totalorder %s25, 1
          %s319 = scalar_select %p318, %s25, 1
          %p320 = scmp.lt.s32.totalorder %s317, 1
          %s321 = scalar_select %p320, %s317, 1
          %s322 = smul.addr %s319, 2
          %s323 = sadd.s32 %s321, %s322
          %s324 = smul.addr %s323, 2
          %s325 = scalar_lea.vmem %s8, %s324
          %s326 = smul.u32 2, %s26
        $region52: #{tpu_custom_call.1} parent=43 // pred_fallthru
          _
      $region44: #{tpu_custom_call.1} parent=5 // pred_fallthru
        _
      %p327 = scmp.le.s32.totalorder 1, %s18
      %p328 = scmp.lt.s32.totalorder %s18, 3
      %p329 = pnand %p327, %p328
      %p330 = pneg %p329
      // Predicated region
      $region53: #{tpu_custom_call.1} parent=5 // pred_check
        _
      $region54: #{tpu_custom_call.1} parent=5 // pred_check_branch
        %332 = sbr.rel (%p329) target = $region56
      $region55: #{tpu_custom_call.1} parent=5 // pred_region
        %s333 = ssub.s32 %s18, 1
        %p334 = pneg %p51
        %p335 = pneg %p48
        %p336 = pneg %p72
        %p337 = pneg %p69
        %p338 = pneg %p93
        %p339 = pneg %p90
        %p340 = pneg %p114
        %p341 = pneg %p111
        %p342 = pneg %p135
        %p343 = pneg %p132
        %p344 = pneg %p156
        %p345 = pneg %p153
        %p346 = pneg %p177
        %p347 = pneg %p174
        %s348 = smul.u32 2, %s28
        %p349 = scmp.lt.s32.totalorder %s27, 1
        %s350 = scalar_select %p349, %s27, 1
        %p351 = scmp.lt.s32.totalorder %s348, 1
        %s352 = scalar_select %p351, %s348, 1
        %s353 = smul.addr %s350, 2
        %s354 = sadd.s32 %s352, %s353
        %s355 = smul.addr %s354, 2
        %s356 = scalar_lea.vmem %s7, %s355
        %p357 = pneg %p205
        %p358 = pneg %p202
        %s359 = smul.u32 2, %s28
        %p360 = scmp.lt.s32.totalorder %s27, 1
        %s361 = scalar_select %p360, %s27, 1
        %p362 = scmp.lt.s32.totalorder %s359, 1
        %s363 = scalar_select %p362, %s359, 1
        %s364 = smul.addr %s361, 2
        %s365 = sadd.s32 %s363, %s364
        %s366 = smul.addr %s365, 2
        %s367 = scalar_lea.vmem %s8, %s366
        %p368 = pneg %p233
        %p369 = pneg %p230
        %p370 = pneg %p261
        %p371 = pneg %p258
        %s372 = sand.u32 %s248, 1
        %s373 = scalar_lea.sflag [#allocation3], %s372
        %s374 = sand.u32 %s248, 1
        %s375 = smul.addr %s374, 16
        %s376 = scalar_lea.vmem [#allocation2], %s375
        %s377 = smul.u32 2, %s28
        %p378 = scmp.lt.s32.totalorder %s27, 1
        %s379 = scalar_select %p378, %s27, 1
        %p380 = scmp.lt.s32.totalorder %s377, 1
        %s381 = scalar_select %p380, %s377, 1
        %s382 = smul.addr %s379, 2
        %s383 = sadd.s32 %s381, %s382
        %s384 = smul.addr %s383, 2
        %s385 = scalar_lea.vmem %s7, %s384
        %s386 = smul.u32 2, %s28
        %s387 = smul.u32 2, %s28
        %p388 = scmp.lt.s32.totalorder %s27, 1
        %s389 = scalar_select %p388, %s27, 1
        %p390 = scmp.lt.s32.totalorder %s387, 1
        %s391 = scalar_select %p390, %s387, 1
        %s392 = smul.addr %s389, 2
        %s393 = sadd.s32 %s391, %s392
        %s394 = smul.addr %s393, 2
        %s395 = scalar_lea.vmem %s8, %s394
        %s396 = smul.u32 2, %s28
        %s397 = smul.u32 2, %s28
        %v398 = vld [vmem:[%s385] sm:$0xf]
        %v399 = vld [vmem:[%s395] sm:$0xf]
        %v400 = vld [vmem:[%s0] sm:$0x3]
        %v401 = vld [vmem:[%s1] sm:$0x3]
        %403 = vset.pattern.permute.xlu0 0
        %404 = vperm.xlu0 %403, %v400
        %v405 = vpop.permute.xlu0 %404
        %v407 = vunpack.c.l.s4 269488144
        %v408 = vunpack.c.0.s8 %v407
        %v409 = vperm.slane %v405, %v408
        %v411 = vsub.f32 %v398, %v409
        %413 = vset.pattern.permute.xlu0 0
        %414 = vperm.xlu0 %413, %v401
        %v415 = vpop.permute.xlu0 %414
        %v417 = vunpack.c.l.s4 269488144
        %v418 = vunpack.c.0.s8 %v417
        %v419 = vperm.slane %v415, %v418
        %v421 = vmul.f32 %v411, %v419
        %v422 = vsub.f32 %v399, %v409
        %v423 = vmul.f32 %v422, %v419
        %v424 = vadd.f32 %v421, 1e-07
        %v426 = vrot.slane %v424, 7
        %v428 = vrcp.pop %v426
        %v429 = vmul.f32 %v426, %v428
        %v430 = vsub.f32 1.0, %v429
        %v431 = vmul.f32 %v428, %v430
        %v432 = vadd.f32 %v428, %v431
        %vm433 = vweird.f32 %v426
        %vm434 = vweird.f32 %v428
        %vm435 = vmor %vm433, %vm434
        %v436 = vsel %vm435, %v428, %v432
        %v437 = vand.u32 2147483647, %v426
        %vm438 = vcmp.eq.f32.partialorder %v437, 8.507059e+37
        %v439 = vand.u32 %v426, 2147483648
        %v440 = vor.u32 1.1754944e-38, %v439
        %v441 = vsel %vm438, %v440, %v436
        %v442 = vmul.f32 %v421, %v441
        %v443 = vadd.f32 %v423, 1e-07
        %v445 = vrot.slane %v443, 7
        %v447 = vrcp.pop %v445
        %v448 = vmul.f32 %v445, %v447
        %v449 = vsub.f32 1.0, %v448
        %v450 = vmul.f32 %v447, %v449
        %v451 = vadd.f32 %v447, %v450
        %vm452 = vweird.f32 %v445
        %vm453 = vweird.f32 %v447
        %vm454 = vmor %vm452, %vm453
        %v455 = vsel %vm454, %v447, %v451
        %v456 = vand.u32 2147483647, %v445
        %vm457 = vcmp.eq.f32.partialorder %v456, 8.507059e+37
        %v458 = vand.u32 %v445, 2147483648
        %v459 = vor.u32 1.1754944e-38, %v458
        %v460 = vsel %vm457, %v459, %v455
        %v461 = vmul.f32 %v423, %v460
        %v462 = vld [vmem:[%s2] sm:$0xff]
        %v463 = vld [vmem:[%s3] sm:$0xff]
        %465 = vst [vmem:[#allocation1] ss:$4 sm:$0xff] %v399
        %v466 = vld.sshfl [vmem:[#allocation1] sm:$0xff pattern:$0x73625140]
        %v467 = vld.sshfl [vmem:[#allocation1 + $0x8] sm:$0xff pattern:$0x73625140]
        %vm468 = vcmask 15360
        %v470 = vsel %vm468, %v463, 0
        %vm472 = vcmask 1041408
        %v473 = vsel %vm472, %v466, 0
        %v475 = vsel %vm472, %v467, 0
        %477 = vmatpush.msra.mxu0 0.0
        %478 = vmatpush.msra.mxu0 0.0
        %479 = vmatpush.msra.mxu0 0.0
        %480 = vmatpush.msra.mxu0 0.0
        %481 = vmatpush.msra.mxu0 0.0
        %482 = vmatpush.msra.mxu0 0.0
        %483 = vmatpush.msra.mxu0 0.0
        %484 = vmatpush.msra.mxu0 0.0
        %485 = vmatpush.msra.mxu0 0.0
        %486 = vmatpush.msra.mxu0 0.0
        %487 = vmatpush.msra.mxu0 0.0
        %488 = vmatpush.msra.mxu0 0.0
        %489 = vmatpush.msra.mxu0 0.0
        %490 = vmatpush.msra.mxu0 0.0
        %491 = vmatpush.msra.mxu0 0.0
        %492 = vmatpush.msra.mxu0 %v473
        %493 = vmatmul.f32.gmra.mxu0 %v470
        %v494 = vpop.f32.mrf.mxu0
        %v495 = vadd.f32 0.0, %v494
        %496 = vdwg.mxu0
        %497 = vmatpush.msra.mxu0 0.0
        %498 = vmatpush.msra.mxu0 0.0
        %499 = vmatpush.msra.mxu0 0.0
        %500 = vmatpush.msra.mxu0 0.0
        %501 = vmatpush.msra.mxu0 0.0
        %502 = vmatpush.msra.mxu0 0.0
        %503 = vmatpush.msra.mxu0 0.0
        %504 = vmatpush.msra.mxu0 0.0
        %505 = vmatpush.msra.mxu0 0.0
        %506 = vmatpush.msra.mxu0 0.0
        %507 = vmatpush.msra.mxu0 0.0
        %508 = vmatpush.msra.mxu0 0.0
        %509 = vmatpush.msra.mxu0 0.0
        %510 = vmatpush.msra.mxu0 0.0
        %511 = vmatpush.msra.mxu0 0.0
        %512 = vmatpush.msra.mxu0 %v475
        %513 = vmatmul.f32.gmra.mxu0 %v470
        %v514 = vpop.f32.mrf.mxu0
        %v515 = vadd.f32 0.0, %v514
        %516 = vdwg.mxu0
        %518 = vst [vmem:[#allocation1] ss:$4 sm:$0xff] %v398
        %v519 = vld.sshfl [vmem:[#allocation1] sm:$0xff pattern:$0x73625140]
        %v520 = vld.sshfl [vmem:[#allocation1 + $0x8] sm:$0xff pattern:$0x73625140]
        %v522 = vsel %vm468, %v462, 0
        %v524 = vsel %vm472, %v519, 0
        %v526 = vsel %vm472, %v520, 0
        %528 = vmatpush.msra.mxu0 0.0
        %529 = vmatpush.msra.mxu0 0.0
        %530 = vmatpush.msra.mxu0 0.0
        %531 = vmatpush.msra.mxu0 0.0
        %532 = vmatpush.msra.mxu0 0.0
        %533 = vmatpush.msra.mxu0 0.0
        %534 = vmatpush.msra.mxu0 0.0
        %535 = vmatpush.msra.mxu0 0.0
        %536 = vmatpush.msra.mxu0 0.0
        %537 = vmatpush.msra.mxu0 0.0
        %538 = vmatpush.msra.mxu0 0.0
        %539 = vmatpush.msra.mxu0 0.0
        %540 = vmatpush.msra.mxu0 0.0
        %541 = vmatpush.msra.mxu0 0.0
        %542 = vmatpush.msra.mxu0 0.0
        %543 = vmatpush.msra.mxu0 %v524
        %544 = vmatmul.f32.gmra.mxu0 %v522
        %v545 = vpop.f32.mrf.mxu0
        %v546 = vadd.f32 %v495, %v545
        %547 = vdwg.mxu0
        %548 = vmatpush.msra.mxu0 0.0
        %549 = vmatpush.msra.mxu0 0.0
        %550 = vmatpush.msra.mxu0 0.0
        %551 = vmatpush.msra.mxu0 0.0
        %552 = vmatpush.msra.mxu0 0.0
        %553 = vmatpush.msra.mxu0 0.0
        %554 = vmatpush.msra.mxu0 0.0
        %555 = vmatpush.msra.mxu0 0.0
        %556 = vmatpush.msra.mxu0 0.0
        %557 = vmatpush.msra.mxu0 0.0
        %558 = vmatpush.msra.mxu0 0.0
        %559 = vmatpush.msra.mxu0 0.0
        %560 = vmatpush.msra.mxu0 0.0
        %561 = vmatpush.msra.mxu0 0.0
        %562 = vmatpush.msra.mxu0 0.0
        %563 = vmatpush.msra.mxu0 %v526
        %564 = vmatmul.f32.gmra.mxu0 %v522
        %v565 = vpop.f32.mrf.mxu0
        %v566 = vadd.f32 %v515, %v565
        %567 = vdwg.mxu0
        %v568 = vld [vmem:[%s4] sm:$0xff]
        %570 = vset.pattern.permute.xlu0 0
        %571 = vperm.xlu0 %570, %v568
        %v572 = vpop.permute.xlu0 %571
        %v575 = vperm.slane %v442, 1
        %v576 = vperm.slane %v442, 3
        %v579 = vperm.slane %v575, 1
        %v580 = vperm.slane %v576, 1
        %v581 = vmul.f32 %v572, %v579
        %v582 = vmul.f32 %v572, %v580
        %v583 = vadd.f32 %v546, %v581
        %v584 = vadd.f32 %v566, %v582
        %v585 = vld [vmem:[%s5] sm:$0xff]
        %587 = vset.pattern.permute.xlu0 0
        %588 = vperm.xlu0 %587, %v585
        %v589 = vpop.permute.xlu0 %588
        %v592 = vperm.slane %v461, 1
        %v593 = vperm.slane %v461, 3
        %v596 = vperm.slane %v592, 1
        %v597 = vperm.slane %v593, 1
        %v598 = vmul.f32 %v589, %v596
        %v599 = vmul.f32 %v589, %v597
        %v600 = vadd.f32 %v583, %v598
        %v601 = vadd.f32 %v584, %v599
        %v602 = vld [vmem:[%s6] sm:$0xff]
        %604 = vset.pattern.permute.xlu0 0
        %605 = vperm.xlu0 %604, %v602
        %v606 = vpop.permute.xlu0 %605
        %v608 = vadd.f32 %v600, %v606
        %v609 = vadd.f32 %v601, %v606
        %610 = vst [vmem:[%s376] sm:$0xff] %v608
        %611 = vst [vmem:[%s376 + $0x8] sm:$0xff] %v609
        %s612 = sand.u32 %s248, 1
        %s613 = scalar_lea.sflag [#allocation3], %s612
        %s614 = sand.u32 %s248, 1
        %s615 = smul.addr %s614, 16
        %s616 = scalar_lea.vmem [#allocation2], %s615
        // Predicated region
        $region57: #{tpu_custom_call.1} parent=55 // pred_check
          %p617 = pneg %p258
        $region58: #{tpu_custom_call.1} parent=55 // pred_check_branch
          %619 = sbr.rel (%p617) target = $region60
        $region59: #{tpu_custom_call.1} parent=55 // pred_region
          %s620 = smul.u32 2, %s28
          %622 = vsyncadd %s613, 0
          %s623 = smul.addr %s27, 2
          %s624 = sadd.s32 %s620, %s623
          %s625 = smul.addr %s624, 8
          %s626 = scalar_lea.hbm %s9, %s625
          %s628 = sshll.u32 %s616, 4
          %s629 = int_to_ptr.vmem [resolvable:$true] %s628
          %s630 = sshll.u32 %s626, 4
          %s631 = int_to_ptr.hbm [resolvable:$true] %s630
          %633 = dma.vmem_to_hbm [thread:$0]  %s629, 256, %s631, %s613
        $region60: #{tpu_custom_call.1} parent=55 // pred_fallthru
          _
      $region56: #{tpu_custom_call.1} parent=5 // pred_fallthru
        _
      %p634 = scmp.le.s32.totalorder 2, %s18
      // Predicated region
      $region61: #{tpu_custom_call.1} parent=5 // pred_check
        %p635 = pneg %p634
      $region62: #{tpu_custom_call.1} parent=5 // pred_check_branch
        %637 = sbr.rel (%p635) target = $region64
      $region63: #{tpu_custom_call.1} parent=5 // pred_region
        %s638 = ssub.s32 %s18, 2
        // Predicated region
        $region65: #{tpu_custom_call.1} parent=63 // pred_check
          %p639 = pneg %p264
        $region66: #{tpu_custom_call.1} parent=63 // pred_check_branch
          %641 = sbr.rel (%p639) target = $region68
        $region67: #{tpu_custom_call.1} parent=63 // pred_region
          %s642 = sand.u32 %s249, 1
          %s643 = scalar_lea.sflag [#allocation3], %s642
          %s644 = sand.u32 %s249, 1
          %s645 = smul.addr %s644, 16
          %s646 = scalar_lea.vmem [#allocation2], %s645
          %648 = dma.done %s643, 256
        $region68: #{tpu_custom_call.1} parent=63 // pred_fallthru
          _
      $region64: #{tpu_custom_call.1} parent=5 // pred_fallthru
        _
    $region6: #{tpu_custom_call.1} parent=1 // loop_footer
      %s22 = sadd.s32 1, %s18
    $region7: #{tpu_custom_call.1} parent=1 // loop_footer_branch
      %17 = sbr.rel target = $region3
    $region8: #{tpu_custom_call.1} parent=1 // loop_exit
      _
    %649 = vsyncpa [#allocation3], 1
    %s650 = scalar_lea.sflag [#allocation3], 1
    %651 = vsyncpa %s650, 1

</llo_original>
